<compile_context>
chip_gen: v7x
topology: tpu7x:2x2x1
jax: 0.10.0
libtpu: 0.0.40
codegen_flags: <defaults>
</compile_context>

<pallas_src>
import jax
import jax.numpy as jnp
from jax.experimental import pallas as pl
from jax.experimental.pallas import tpu as pltpu

VOCAB = 50265
H_DIM = 128          # hidden size (lane-aligned)
PAD_IDX = 1          # nn.Embedding(..., padding_idx=1) -> row 1 is zeros
NSEM = 8             # DMA-semaphore ring depth (bounds in-flight row gathers)


def _gather_rows(ids_ref, emb_hbm, dst_ref, sem):
    """Gather dst_ref.shape[0] rows of emb_hbm (HBM) into dst_ref (VMEM).

    * all SMEM scalar reads + clamps are done before any .wait()
    * each copy descriptor is built once and reused for start and wait
    * a fixed-depth semaphore ring bounds in-flight DMAs for any l
    l is a trace-time constant, so the Python loops fully unroll.
    """
    l = dst_ref.shape[0]
    V = emb_hbm.shape[0]
    nsem = min(l, NSEM)

    # In-kernel clamp: a bad token id can never drive an OOB HBM DMA.
    # (Note: silently maps out-of-range ids onto row 0 / V-1 instead of
    # erroring like PyTorch would.)
    idxs = [jnp.minimum(jnp.maximum(ids_ref[i], 0), V - 1) for i in range(l)]

    copies = []
    for i in range(l):
        cp = pltpu.make_async_copy(
            emb_hbm.at[pl.ds(idxs[i], 1), :],
            dst_ref.at[pl.ds(i, 1), :],
            sem.at[i % nsem],
        )
        if i >= nsem:                  # about to reuse this ring slot: drain it
            copies[i - nsem].wait()
        cp.start()
        copies.append(cp)

    for i in range(max(0, l - nsem), l):   # drain the tail
        copies[i].wait()


def _make_kernel(same_dtype):
    if same_dtype:
        # Rows land directly in the output block; single in-place fused
        # multiply-add over the dense (l, H) slab, single unmasked store.
        def kernel(ids_ref, emb_hbm, w_ref, b_ref, out_ref, sem):
            _gather_rows(ids_ref, emb_hbm, out_ref, sem)
            out_ref[...] = out_ref[...] * w_ref[...] + b_ref[...]
    else:
        # Mixed dtype (e.g. bf16 table, f32 params): gather into a scratch in
        # the table's dtype, upcast once inside the fused pass (keeps the math
        # in f32 — important on v5e, which has no bf16 VPU).
        def kernel(ids_ref, emb_hbm, w_ref, b_ref, out_ref, row_buf, sem):
            _gather_rows(ids_ref, emb_hbm, row_buf, sem)
            out_ref[...] = (
                row_buf[...].astype(out_ref.dtype) * w_ref[...] + b_ref[...]
            )
    return kernel


def softprompt_forward(input_ids, embed_table, weight, bias):
    """input_ids: (B, l) int; embed_table: (V, H); weight/bias: (1, l, H).

    Returns (1, l, H), matching the PyTorch module's forward.
    """
    _, l = input_ids.shape
    V, H = embed_table.shape

    # Promote like torch would (e.g. bf16 table * f32 weight -> f32 result).
    out_dtype = jnp.result_type(embed_table.dtype, weight.dtype, bias.dtype)
    same_dtype = embed_table.dtype == out_dtype

    # torch: input_ids[0].  No wrapper-side clip (clamp lives in the kernel);
    # only cast when the incoming dtype actually differs.
    ids0 = input_ids[0]
    if ids0.dtype != jnp.int32:
        ids0 = ids0.astype(jnp.int32)
    w2d = weight.reshape(l, H)
    b2d = bias.reshape(l, H)
    if w2d.dtype != out_dtype:
        w2d = w2d.astype(out_dtype)
    if b2d.dtype != out_dtype:
        b2d = b2d.astype(out_dtype)

    nsem = min(l, NSEM)
    scratch = [pltpu.SemaphoreType.DMA((nsem,))]
    if not same_dtype:
        scratch = [pltpu.VMEM((l, H), embed_table.dtype)] + scratch

    out = pl.pallas_call(
        _make_kernel(same_dtype),
        out_shape=jax.ShapeDtypeStruct((l, H), out_dtype),
        grid_spec=pltpu.PrefetchScalarGridSpec(
            num_scalar_prefetch=1,
            grid=(1,),
            in_specs=[
                # Embedding table stays in HBM; only the l needed rows move.
                pl.BlockSpec(memory_space=pl.ANY),
                # weight / bias: one resident (l, H) slab each, fetched once.
                pl.BlockSpec((l, H), lambda i, ids: (0, 0)),
                pl.BlockSpec((l, H), lambda i, ids: (0, 0)),
            ],
            out_specs=pl.BlockSpec((l, H), lambda i, ids: (0, 0)),
            scratch_shapes=scratch,
        ),
        compiler_params=pltpu.CompilerParams(
            dimension_semantics=("arbitrary",)),
    )(ids0, embed_table, w2d, b2d)

    # TODO(synk): for l >> a few hundred, switch the gather to a chunked
    # pipelined loop and tile (l, H) over a grid axis (2-way parallel on v7x).
    return out.reshape(1, l, H)


if __name__ == "__main__":
    key = jax.random.PRNGKey(0)
    k_emb, k_ids, k_w, k_b = jax.random.split(key, 4)

    l = 8          # soft-prompt length (multiple of 8 -> full f32 sublane tile)
    B = 2          # batch (only row 0 is used, per the module)

    # Parameter shapes from the module's __init__ (values perturbed from the
    # ones/zeros init so the fused multiply-add is actually exercised).
    embed_table = jax.random.normal(k_emb, (VOCAB, H_DIM), dtype=jnp.float32)
    embed_table = embed_table.at[PAD_IDX].set(0.0)        # padding_idx=1 -> zero row
    weight = 1.0 + 0.1 * jax.random.normal(k_w, (1, l, H_DIM), dtype=jnp.float32)
    bias = 0.1 * jax.random.normal(k_b, (1, l, H_DIM), dtype=jnp.float32)

    input_ids = jax.random.randint(k_ids, (B, l), 0, VOCAB, dtype=jnp.int32)
    input_ids = input_ids.at[0, 3].set(PAD_IDX)           # exercise the padding row

    out = softprompt_forward(input_ids, embed_table, weight, bias)
    out = jax.block_until_ready(out)

    # Pure-JAX reference check.
    ref = embed_table[input_ids[0]][None, :, :] * weight + bias
    assert out.shape == (1, l, H_DIM), out.shape
    assert jnp.allclose(out, ref, atol=1e-6), "mismatch vs reference"

    print("KERNEL_OK")
</pallas_src>

<mosaic_0001>
module attributes {stable_mosaic.version = 11 : i64} {
  func.func @kernel(%arg0: i32, %arg1: memref<8xi32, #tpu.memory_space<smem>>, %arg2: memref<50265x128xf32, #tpu.memory_space<any>>, %arg3: memref<8x128xf32, #tpu.memory_space<vmem>>, %arg4: memref<8x128xf32, #tpu.memory_space<vmem>>, %arg5: memref<8x128xf32, #tpu.memory_space<vmem>>, %arg6: memref<8x!tpu.dma_semaphore, #tpu.memory_space<semaphore_mem>>) attributes {dimension_semantics = [#tpu.dimension_semantics<arbitrary>], iteration_bounds = array<i64: 1>, scalar_prefetch = 1 : i64, scratch_operands = 1 : i64, tpu.core_type = #tpu.core_type<tc>, window_params = [{}, {pipeline_mode = #tpu.pipeline_mode<synchronous>, transform_indices = @transform_1, window_bounds = array<i64: 8, 128>}, {pipeline_mode = #tpu.pipeline_mode<synchronous>, transform_indices = @transform_2, window_bounds = array<i64: 8, 128>}, {pipeline_mode = #tpu.pipeline_mode<synchronous>, transform_indices = @transform_3, window_bounds = array<i64: 8, 128>}]} {
    %c0 = arith.constant 0 : index
    %0 = memref.load %arg1[%c0] : memref<8xi32, #tpu.memory_space<smem>>
    %c0_i32 = arith.constant 0 : i32
    %1 = arith.maxsi %0, %c0_i32 : i32
    %c50264_i32 = arith.constant 50264 : i32
    %2 = arith.minsi %1, %c50264_i32 : i32
    %c1 = arith.constant 1 : index
    %3 = memref.load %arg1[%c1] : memref<8xi32, #tpu.memory_space<smem>>
    %c0_i32_0 = arith.constant 0 : i32
    %4 = arith.maxsi %3, %c0_i32_0 : i32
    %c50264_i32_1 = arith.constant 50264 : i32
    %5 = arith.minsi %4, %c50264_i32_1 : i32
    %c2 = arith.constant 2 : index
    %6 = memref.load %arg1[%c2] : memref<8xi32, #tpu.memory_space<smem>>
    %c0_i32_2 = arith.constant 0 : i32
    %7 = arith.maxsi %6, %c0_i32_2 : i32
    %c50264_i32_3 = arith.constant 50264 : i32
    %8 = arith.minsi %7, %c50264_i32_3 : i32
    %c3 = arith.constant 3 : index
    %9 = memref.load %arg1[%c3] : memref<8xi32, #tpu.memory_space<smem>>
    %c0_i32_4 = arith.constant 0 : i32
    %10 = arith.maxsi %9, %c0_i32_4 : i32
    %c50264_i32_5 = arith.constant 50264 : i32
    %11 = arith.minsi %10, %c50264_i32_5 : i32
    %c4 = arith.constant 4 : index
    %12 = memref.load %arg1[%c4] : memref<8xi32, #tpu.memory_space<smem>>
    %c0_i32_6 = arith.constant 0 : i32
    %13 = arith.maxsi %12, %c0_i32_6 : i32
    %c50264_i32_7 = arith.constant 50264 : i32
    %14 = arith.minsi %13, %c50264_i32_7 : i32
    %c5 = arith.constant 5 : index
    %15 = memref.load %arg1[%c5] : memref<8xi32, #tpu.memory_space<smem>>
    %c0_i32_8 = arith.constant 0 : i32
    %16 = arith.maxsi %15, %c0_i32_8 : i32
    %c50264_i32_9 = arith.constant 50264 : i32
    %17 = arith.minsi %16, %c50264_i32_9 : i32
    %c6 = arith.constant 6 : index
    %18 = memref.load %arg1[%c6] : memref<8xi32, #tpu.memory_space<smem>>
    %c0_i32_10 = arith.constant 0 : i32
    %19 = arith.maxsi %18, %c0_i32_10 : i32
    %c50264_i32_11 = arith.constant 50264 : i32
    %20 = arith.minsi %19, %c50264_i32_11 : i32
    %c7 = arith.constant 7 : index
    %21 = memref.load %arg1[%c7] : memref<8xi32, #tpu.memory_space<smem>>
    %c0_i32_12 = arith.constant 0 : i32
    %22 = arith.maxsi %21, %c0_i32_12 : i32
    %c50264_i32_13 = arith.constant 50264 : i32
    %23 = arith.minsi %22, %c50264_i32_13 : i32
    %c0_i32_14 = arith.constant 0 : i32
    %c0_i32_15 = arith.constant 0 : i32
    %24 = tpu.memref_slice %arg2[%2, %c0_i32_15] : memref<50265x128xf32, #tpu.memory_space<any>> -> memref<1x128xf32, #tpu.memory_space<any>>
    %c0_i32_16 = arith.constant 0 : i32
    %c0_i32_17 = arith.constant 0 : i32
    %25 = tpu.memref_slice %arg5[%c0_i32_16, %c0_i32_17] : memref<8x128xf32, #tpu.memory_space<vmem>> -> memref<1x128xf32, #tpu.memory_space<vmem>>
    %26 = tpu.memref_slice %arg6[%c0_i32_14] : memref<8x!tpu.dma_semaphore, #tpu.memory_space<semaphore_mem>> -> memref<1x!tpu.dma_semaphore, #tpu.memory_space<semaphore_mem>>
    %27 = tpu.memref_squeeze %26 : memref<1x!tpu.dma_semaphore, #tpu.memory_space<semaphore_mem>> -> memref<!tpu.dma_semaphore, #tpu.memory_space<semaphore_mem>>
    tpu.enqueue_dma source(%24 : memref<1x128xf32, #tpu.memory_space<any>>) target(%25 : memref<1x128xf32, #tpu.memory_space<vmem>>) target_semaphore(%27 : memref<!tpu.dma_semaphore, #tpu.memory_space<semaphore_mem>>)
    %c1_i32 = arith.constant 1 : i32
    %c0_i32_18 = arith.constant 0 : i32
    %28 = tpu.memref_slice %arg2[%5, %c0_i32_18] : memref<50265x128xf32, #tpu.memory_space<any>> -> memref<1x128xf32, #tpu.memory_space<any>>
    %c1_i32_19 = arith.constant 1 : i32
    %c0_i32_20 = arith.constant 0 : i32
    %29 = tpu.memref_slice %arg5[%c1_i32_19, %c0_i32_20] : memref<8x128xf32, #tpu.memory_space<vmem>> -> memref<1x128xf32, #tpu.memory_space<vmem>>
    %30 = tpu.memref_slice %arg6[%c1_i32] : memref<8x!tpu.dma_semaphore, #tpu.memory_space<semaphore_mem>> -> memref<1x!tpu.dma_semaphore, #tpu.memory_space<semaphore_mem>>
    %31 = tpu.memref_squeeze %30 : memref<1x!tpu.dma_semaphore, #tpu.memory_space<semaphore_mem>> -> memref<!tpu.dma_semaphore, #tpu.memory_space<semaphore_mem>>
    tpu.enqueue_dma source(%28 : memref<1x128xf32, #tpu.memory_space<any>>) target(%29 : memref<1x128xf32, #tpu.memory_space<vmem>>) target_semaphore(%31 : memref<!tpu.dma_semaphore, #tpu.memory_space<semaphore_mem>>)
    %c2_i32 = arith.constant 2 : i32
    %c0_i32_21 = arith.constant 0 : i32
    %32 = tpu.memref_slice %arg2[%8, %c0_i32_21] : memref<50265x128xf32, #tpu.memory_space<any>> -> memref<1x128xf32, #tpu.memory_space<any>>
    %c2_i32_22 = arith.constant 2 : i32
    %c0_i32_23 = arith.constant 0 : i32
    %33 = tpu.memref_slice %arg5[%c2_i32_22, %c0_i32_23] : memref<8x128xf32, #tpu.memory_space<vmem>> -> memref<1x128xf32, #tpu.memory_space<vmem>>
    %34 = tpu.memref_slice %arg6[%c2_i32] : memref<8x!tpu.dma_semaphore, #tpu.memory_space<semaphore_mem>> -> memref<1x!tpu.dma_semaphore, #tpu.memory_space<semaphore_mem>>
    %35 = tpu.memref_squeeze %34 : memref<1x!tpu.dma_semaphore, #tpu.memory_space<semaphore_mem>> -> memref<!tpu.dma_semaphore, #tpu.memory_space<semaphore_mem>>
    tpu.enqueue_dma source(%32 : memref<1x128xf32, #tpu.memory_space<any>>) target(%33 : memref<1x128xf32, #tpu.memory_space<vmem>>) target_semaphore(%35 : memref<!tpu.dma_semaphore, #tpu.memory_space<semaphore_mem>>)
    %c3_i32 = arith.constant 3 : i32
    %c0_i32_24 = arith.constant 0 : i32
    %36 = tpu.memref_slice %arg2[%11, %c0_i32_24] : memref<50265x128xf32, #tpu.memory_space<any>> -> memref<1x128xf32, #tpu.memory_space<any>>
    %c3_i32_25 = arith.constant 3 : i32
    %c0_i32_26 = arith.constant 0 : i32
    %37 = tpu.memref_slice %arg5[%c3_i32_25, %c0_i32_26] : memref<8x128xf32, #tpu.memory_space<vmem>> -> memref<1x128xf32, #tpu.memory_space<vmem>>
    %38 = tpu.memref_slice %arg6[%c3_i32] : memref<8x!tpu.dma_semaphore, #tpu.memory_space<semaphore_mem>> -> memref<1x!tpu.dma_semaphore, #tpu.memory_space<semaphore_mem>>
    %39 = tpu.memref_squeeze %38 : memref<1x!tpu.dma_semaphore, #tpu.memory_space<semaphore_mem>> -> memref<!tpu.dma_semaphore, #tpu.memory_space<semaphore_mem>>
    tpu.enqueue_dma source(%36 : memref<1x128xf32, #tpu.memory_space<any>>) target(%37 : memref<1x128xf32, #tpu.memory_space<vmem>>) target_semaphore(%39 : memref<!tpu.dma_semaphore, #tpu.memory_space<semaphore_mem>>)
    %c4_i32 = arith.constant 4 : i32
    %c0_i32_27 = arith.constant 0 : i32
    %40 = tpu.memref_slice %arg2[%14, %c0_i32_27] : memref<50265x128xf32, #tpu.memory_space<any>> -> memref<1x128xf32, #tpu.memory_space<any>>
    %c4_i32_28 = arith.constant 4 : i32
    %c0_i32_29 = arith.constant 0 : i32
    %41 = tpu.memref_slice %arg5[%c4_i32_28, %c0_i32_29] : memref<8x128xf32, #tpu.memory_space<vmem>> -> memref<1x128xf32, #tpu.memory_space<vmem>>
    %42 = tpu.memref_slice %arg6[%c4_i32] : memref<8x!tpu.dma_semaphore, #tpu.memory_space<semaphore_mem>> -> memref<1x!tpu.dma_semaphore, #tpu.memory_space<semaphore_mem>>
    %43 = tpu.memref_squeeze %42 : memref<1x!tpu.dma_semaphore, #tpu.memory_space<semaphore_mem>> -> memref<!tpu.dma_semaphore, #tpu.memory_space<semaphore_mem>>
    tpu.enqueue_dma source(%40 : memref<1x128xf32, #tpu.memory_space<any>>) target(%41 : memref<1x128xf32, #tpu.memory_space<vmem>>) target_semaphore(%43 : memref<!tpu.dma_semaphore, #tpu.memory_space<semaphore_mem>>)
    %c5_i32 = arith.constant 5 : i32
    %c0_i32_30 = arith.constant 0 : i32
    %44 = tpu.memref_slice %arg2[%17, %c0_i32_30] : memref<50265x128xf32, #tpu.memory_space<any>> -> memref<1x128xf32, #tpu.memory_space<any>>
    %c5_i32_31 = arith.constant 5 : i32
    %c0_i32_32 = arith.constant 0 : i32
    %45 = tpu.memref_slice %arg5[%c5_i32_31, %c0_i32_32] : memref<8x128xf32, #tpu.memory_space<vmem>> -> memref<1x128xf32, #tpu.memory_space<vmem>>
    %46 = tpu.memref_slice %arg6[%c5_i32] : memref<8x!tpu.dma_semaphore, #tpu.memory_space<semaphore_mem>> -> memref<1x!tpu.dma_semaphore, #tpu.memory_space<semaphore_mem>>
    %47 = tpu.memref_squeeze %46 : memref<1x!tpu.dma_semaphore, #tpu.memory_space<semaphore_mem>> -> memref<!tpu.dma_semaphore, #tpu.memory_space<semaphore_mem>>
    tpu.enqueue_dma source(%44 : memref<1x128xf32, #tpu.memory_space<any>>) target(%45 : memref<1x128xf32, #tpu.memory_space<vmem>>) target_semaphore(%47 : memref<!tpu.dma_semaphore, #tpu.memory_space<semaphore_mem>>)
    %c6_i32 = arith.constant 6 : i32
    %c0_i32_33 = arith.constant 0 : i32
    %48 = tpu.memref_slice %arg2[%20, %c0_i32_33] : memref<50265x128xf32, #tpu.memory_space<any>> -> memref<1x128xf32, #tpu.memory_space<any>>
    %c6_i32_34 = arith.constant 6 : i32
    %c0_i32_35 = arith.constant 0 : i32
    %49 = tpu.memref_slice %arg5[%c6_i32_34, %c0_i32_35] : memref<8x128xf32, #tpu.memory_space<vmem>> -> memref<1x128xf32, #tpu.memory_space<vmem>>
    %50 = tpu.memref_slice %arg6[%c6_i32] : memref<8x!tpu.dma_semaphore, #tpu.memory_space<semaphore_mem>> -> memref<1x!tpu.dma_semaphore, #tpu.memory_space<semaphore_mem>>
    %51 = tpu.memref_squeeze %50 : memref<1x!tpu.dma_semaphore, #tpu.memory_space<semaphore_mem>> -> memref<!tpu.dma_semaphore, #tpu.memory_space<semaphore_mem>>
    tpu.enqueue_dma source(%48 : memref<1x128xf32, #tpu.memory_space<any>>) target(%49 : memref<1x128xf32, #tpu.memory_space<vmem>>) target_semaphore(%51 : memref<!tpu.dma_semaphore, #tpu.memory_space<semaphore_mem>>)
    %c7_i32 = arith.constant 7 : i32
    %c0_i32_36 = arith.constant 0 : i32
    %52 = tpu.memref_slice %arg2[%23, %c0_i32_36] : memref<50265x128xf32, #tpu.memory_space<any>> -> memref<1x128xf32, #tpu.memory_space<any>>
    %c7_i32_37 = arith.constant 7 : i32
    %c0_i32_38 = arith.constant 0 : i32
    %53 = tpu.memref_slice %arg5[%c7_i32_37, %c0_i32_38] : memref<8x128xf32, #tpu.memory_space<vmem>> -> memref<1x128xf32, #tpu.memory_space<vmem>>
    %54 = tpu.memref_slice %arg6[%c7_i32] : memref<8x!tpu.dma_semaphore, #tpu.memory_space<semaphore_mem>> -> memref<1x!tpu.dma_semaphore, #tpu.memory_space<semaphore_mem>>
    %55 = tpu.memref_squeeze %54 : memref<1x!tpu.dma_semaphore, #tpu.memory_space<semaphore_mem>> -> memref<!tpu.dma_semaphore, #tpu.memory_space<semaphore_mem>>
    tpu.enqueue_dma source(%52 : memref<1x128xf32, #tpu.memory_space<any>>) target(%53 : memref<1x128xf32, #tpu.memory_space<vmem>>) target_semaphore(%55 : memref<!tpu.dma_semaphore, #tpu.memory_space<semaphore_mem>>)
    %c0_i32_39 = arith.constant 0 : i32
    %c0_i32_40 = arith.constant 0 : i32
    %56 = tpu.memref_slice %arg2[%2, %c0_i32_40] : memref<50265x128xf32, #tpu.memory_space<any>> -> memref<1x128xf32, #tpu.memory_space<any>>
    %c0_i32_41 = arith.constant 0 : i32
    %c0_i32_42 = arith.constant 0 : i32
    %57 = tpu.memref_slice %arg5[%c0_i32_41, %c0_i32_42] : memref<8x128xf32, #tpu.memory_space<vmem>> -> memref<1x128xf32, #tpu.memory_space<vmem>>
    %58 = tpu.memref_slice %arg6[%c0_i32_39] : memref<8x!tpu.dma_semaphore, #tpu.memory_space<semaphore_mem>> -> memref<1x!tpu.dma_semaphore, #tpu.memory_space<semaphore_mem>>
    %59 = tpu.memref_squeeze %58 : memref<1x!tpu.dma_semaphore, #tpu.memory_space<semaphore_mem>> -> memref<!tpu.dma_semaphore, #tpu.memory_space<semaphore_mem>>
    tpu.wait_dma2 semaphore(%59 : memref<!tpu.dma_semaphore, #tpu.memory_space<semaphore_mem>>) src(%56 : memref<1x128xf32, #tpu.memory_space<any>>) dst(%57 : memref<1x128xf32, #tpu.memory_space<vmem>>)
    %c1_i32_43 = arith.constant 1 : i32
    %c0_i32_44 = arith.constant 0 : i32
    %60 = tpu.memref_slice %arg2[%5, %c0_i32_44] : memref<50265x128xf32, #tpu.memory_space<any>> -> memref<1x128xf32, #tpu.memory_space<any>>
    %c1_i32_45 = arith.constant 1 : i32
    %c0_i32_46 = arith.constant 0 : i32
    %61 = tpu.memref_slice %arg5[%c1_i32_45, %c0_i32_46] : memref<8x128xf32, #tpu.memory_space<vmem>> -> memref<1x128xf32, #tpu.memory_space<vmem>>
    %62 = tpu.memref_slice %arg6[%c1_i32_43] : memref<8x!tpu.dma_semaphore, #tpu.memory_space<semaphore_mem>> -> memref<1x!tpu.dma_semaphore, #tpu.memory_space<semaphore_mem>>
    %63 = tpu.memref_squeeze %62 : memref<1x!tpu.dma_semaphore, #tpu.memory_space<semaphore_mem>> -> memref<!tpu.dma_semaphore, #tpu.memory_space<semaphore_mem>>
    tpu.wait_dma2 semaphore(%63 : memref<!tpu.dma_semaphore, #tpu.memory_space<semaphore_mem>>) src(%60 : memref<1x128xf32, #tpu.memory_space<any>>) dst(%61 : memref<1x128xf32, #tpu.memory_space<vmem>>)
    %c2_i32_47 = arith.constant 2 : i32
    %c0_i32_48 = arith.constant 0 : i32
    %64 = tpu.memref_slice %arg2[%8, %c0_i32_48] : memref<50265x128xf32, #tpu.memory_space<any>> -> memref<1x128xf32, #tpu.memory_space<any>>
    %c2_i32_49 = arith.constant 2 : i32
    %c0_i32_50 = arith.constant 0 : i32
    %65 = tpu.memref_slice %arg5[%c2_i32_49, %c0_i32_50] : memref<8x128xf32, #tpu.memory_space<vmem>> -> memref<1x128xf32, #tpu.memory_space<vmem>>
    %66 = tpu.memref_slice %arg6[%c2_i32_47] : memref<8x!tpu.dma_semaphore, #tpu.memory_space<semaphore_mem>> -> memref<1x!tpu.dma_semaphore, #tpu.memory_space<semaphore_mem>>
    %67 = tpu.memref_squeeze %66 : memref<1x!tpu.dma_semaphore, #tpu.memory_space<semaphore_mem>> -> memref<!tpu.dma_semaphore, #tpu.memory_space<semaphore_mem>>
    tpu.wait_dma2 semaphore(%67 : memref<!tpu.dma_semaphore, #tpu.memory_space<semaphore_mem>>) src(%64 : memref<1x128xf32, #tpu.memory_space<any>>) dst(%65 : memref<1x128xf32, #tpu.memory_space<vmem>>)
    %c3_i32_51 = arith.constant 3 : i32
    %c0_i32_52 = arith.constant 0 : i32
    %68 = tpu.memref_slice %arg2[%11, %c0_i32_52] : memref<50265x128xf32, #tpu.memory_space<any>> -> memref<1x128xf32, #tpu.memory_space<any>>
    %c3_i32_53 = arith.constant 3 : i32
    %c0_i32_54 = arith.constant 0 : i32
    %69 = tpu.memref_slice %arg5[%c3_i32_53, %c0_i32_54] : memref<8x128xf32, #tpu.memory_space<vmem>> -> memref<1x128xf32, #tpu.memory_space<vmem>>
    %70 = tpu.memref_slice %arg6[%c3_i32_51] : memref<8x!tpu.dma_semaphore, #tpu.memory_space<semaphore_mem>> -> memref<1x!tpu.dma_semaphore, #tpu.memory_space<semaphore_mem>>
    %71 = tpu.memref_squeeze %70 : memref<1x!tpu.dma_semaphore, #tpu.memory_space<semaphore_mem>> -> memref<!tpu.dma_semaphore, #tpu.memory_space<semaphore_mem>>
    tpu.wait_dma2 semaphore(%71 : memref<!tpu.dma_semaphore, #tpu.memory_space<semaphore_mem>>) src(%68 : memref<1x128xf32, #tpu.memory_space<any>>) dst(%69 : memref<1x128xf32, #tpu.memory_space<vmem>>)
    %c4_i32_55 = arith.constant 4 : i32
    %c0_i32_56 = arith.constant 0 : i32
    %72 = tpu.memref_slice %arg2[%14, %c0_i32_56] : memref<50265x128xf32, #tpu.memory_space<any>> -> memref<1x128xf32, #tpu.memory_space<any>>
    %c4_i32_57 = arith.constant 4 : i32
    %c0_i32_58 = arith.constant 0 : i32
    %73 = tpu.memref_slice %arg5[%c4_i32_57, %c0_i32_58] : memref<8x128xf32, #tpu.memory_space<vmem>> -> memref<1x128xf32, #tpu.memory_space<vmem>>
    %74 = tpu.memref_slice %arg6[%c4_i32_55] : memref<8x!tpu.dma_semaphore, #tpu.memory_space<semaphore_mem>> -> memref<1x!tpu.dma_semaphore, #tpu.memory_space<semaphore_mem>>
    %75 = tpu.memref_squeeze %74 : memref<1x!tpu.dma_semaphore, #tpu.memory_space<semaphore_mem>> -> memref<!tpu.dma_semaphore, #tpu.memory_space<semaphore_mem>>
    tpu.wait_dma2 semaphore(%75 : memref<!tpu.dma_semaphore, #tpu.memory_space<semaphore_mem>>) src(%72 : memref<1x128xf32, #tpu.memory_space<any>>) dst(%73 : memref<1x128xf32, #tpu.memory_space<vmem>>)
    %c5_i32_59 = arith.constant 5 : i32
    %c0_i32_60 = arith.constant 0 : i32
    %76 = tpu.memref_slice %arg2[%17, %c0_i32_60] : memref<50265x128xf32, #tpu.memory_space<any>> -> memref<1x128xf32, #tpu.memory_space<any>>
    %c5_i32_61 = arith.constant 5 : i32
    %c0_i32_62 = arith.constant 0 : i32
    %77 = tpu.memref_slice %arg5[%c5_i32_61, %c0_i32_62] : memref<8x128xf32, #tpu.memory_space<vmem>> -> memref<1x128xf32, #tpu.memory_space<vmem>>
    %78 = tpu.memref_slice %arg6[%c5_i32_59] : memref<8x!tpu.dma_semaphore, #tpu.memory_space<semaphore_mem>> -> memref<1x!tpu.dma_semaphore, #tpu.memory_space<semaphore_mem>>
    %79 = tpu.memref_squeeze %78 : memref<1x!tpu.dma_semaphore, #tpu.memory_space<semaphore_mem>> -> memref<!tpu.dma_semaphore, #tpu.memory_space<semaphore_mem>>
    tpu.wait_dma2 semaphore(%79 : memref<!tpu.dma_semaphore, #tpu.memory_space<semaphore_mem>>) src(%76 : memref<1x128xf32, #tpu.memory_space<any>>) dst(%77 : memref<1x128xf32, #tpu.memory_space<vmem>>)
    %c6_i32_63 = arith.constant 6 : i32
    %c0_i32_64 = arith.constant 0 : i32
    %80 = tpu.memref_slice %arg2[%20, %c0_i32_64] : memref<50265x128xf32, #tpu.memory_space<any>> -> memref<1x128xf32, #tpu.memory_space<any>>
    %c6_i32_65 = arith.constant 6 : i32
    %c0_i32_66 = arith.constant 0 : i32
    %81 = tpu.memref_slice %arg5[%c6_i32_65, %c0_i32_66] : memref<8x128xf32, #tpu.memory_space<vmem>> -> memref<1x128xf32, #tpu.memory_space<vmem>>
    %82 = tpu.memref_slice %arg6[%c6_i32_63] : memref<8x!tpu.dma_semaphore, #tpu.memory_space<semaphore_mem>> -> memref<1x!tpu.dma_semaphore, #tpu.memory_space<semaphore_mem>>
    %83 = tpu.memref_squeeze %82 : memref<1x!tpu.dma_semaphore, #tpu.memory_space<semaphore_mem>> -> memref<!tpu.dma_semaphore, #tpu.memory_space<semaphore_mem>>
    tpu.wait_dma2 semaphore(%83 : memref<!tpu.dma_semaphore, #tpu.memory_space<semaphore_mem>>) src(%80 : memref<1x128xf32, #tpu.memory_space<any>>) dst(%81 : memref<1x128xf32, #tpu.memory_space<vmem>>)
    %c7_i32_67 = arith.constant 7 : i32
    %c0_i32_68 = arith.constant 0 : i32
    %84 = tpu.memref_slice %arg2[%23, %c0_i32_68] : memref<50265x128xf32, #tpu.memory_space<any>> -> memref<1x128xf32, #tpu.memory_space<any>>
    %c7_i32_69 = arith.constant 7 : i32
    %c0_i32_70 = arith.constant 0 : i32
    %85 = tpu.memref_slice %arg5[%c7_i32_69, %c0_i32_70] : memref<8x128xf32, #tpu.memory_space<vmem>> -> memref<1x128xf32, #tpu.memory_space<vmem>>
    %86 = tpu.memref_slice %arg6[%c7_i32_67] : memref<8x!tpu.dma_semaphore, #tpu.memory_space<semaphore_mem>> -> memref<1x!tpu.dma_semaphore, #tpu.memory_space<semaphore_mem>>
    %87 = tpu.memref_squeeze %86 : memref<1x!tpu.dma_semaphore, #tpu.memory_space<semaphore_mem>> -> memref<!tpu.dma_semaphore, #tpu.memory_space<semaphore_mem>>
    tpu.wait_dma2 semaphore(%87 : memref<!tpu.dma_semaphore, #tpu.memory_space<semaphore_mem>>) src(%84 : memref<1x128xf32, #tpu.memory_space<any>>) dst(%85 : memref<1x128xf32, #tpu.memory_space<vmem>>)
    %c0_71 = arith.constant 0 : index
    %c0_72 = arith.constant 0 : index
    %88 = vector.load %arg5[%c0_71, %c0_72] : memref<8x128xf32, #tpu.memory_space<vmem>>, vector<8x128xf32>
    %c0_73 = arith.constant 0 : index
    %c0_74 = arith.constant 0 : index
    %89 = vector.load %arg3[%c0_73, %c0_74] : memref<8x128xf32, #tpu.memory_space<vmem>>, vector<8x128xf32>
    %90 = arith.mulf %88, %89 : vector<8x128xf32>
    %c0_75 = arith.constant 0 : index
    %c0_76 = arith.constant 0 : index
    %91 = vector.load %arg4[%c0_75, %c0_76] : memref<8x128xf32, #tpu.memory_space<vmem>>, vector<8x128xf32>
    %92 = arith.addf %90, %91 : vector<8x128xf32>
    %c0_77 = arith.constant 0 : index
    %c0_78 = arith.constant 0 : index
    %93 = vector.load %arg5[%c0_77, %c0_78] : memref<8x128xf32, #tpu.memory_space<vmem>>, vector<8x128xf32>
    tpu.vector_store %arg5[%c0_77, %c0_78], %92 {strides = array<i32>} : memref<8x128xf32, #tpu.memory_space<vmem>>, vector<8x128xf32>,
    return
  }
  func.func @transform_1(%arg0: i32, %arg1: memref<8xi32, #tpu.memory_space<smem>>) -> (i32, i32) {
    %c0_i32 = arith.constant 0 : i32
    %c0_i32_0 = arith.constant 0 : i32
    %c0_i32_1 = arith.constant 0 : i32
    return %c0_i32, %c0_i32_0 : i32, i32
  }
  func.func @transform_2(%arg0: i32, %arg1: memref<8xi32, #tpu.memory_space<smem>>) -> (i32, i32) {
    %c0_i32 = arith.constant 0 : i32
    %c0_i32_0 = arith.constant 0 : i32
    %c0_i32_1 = arith.constant 0 : i32
    return %c0_i32, %c0_i32_0 : i32, i32
  }
  func.func @transform_3(%arg0: i32, %arg1: memref<8xi32, #tpu.memory_space<smem>>) -> (i32, i32) {
    %c0_i32 = arith.constant 0 : i32
    %c0_i32_0 = arith.constant 0 : i32
    %c0_i32_1 = arith.constant 0 : i32
    return %c0_i32, %c0_i32_0 : i32, i32
  }
}

</mosaic_0001>

<llo_original>
// kernel: tpu_custom_call.1
$region0: #{tpu_custom_call.1}
  #allocation0 [shape = 'u32[]', space=smem, size = 0x4, offset = 0x4, fixed_abs, tag = 'smem constant byte address 0x4 - core index']
  #allocation1 [shape = 'u32[144,128]{1,0:T(1,128)}', space=vmem, size = 0x12000, scoped, tag = 'internal scratch']
  #allocation2 [shape = 's32[8]{0}', space=sflag, size = 0x20, scoped, tag = 'scratch operand']
  #allocation3 [shape = 's32[1]{0}', space=sflag, size = 0x4, scoped, tag = 'scoped memory for tpu_custom_call.1']
  #allocation4 [shape = 'u8[512]{0}', space=smem, size = 0x200, scoped, tag = 'prefetched SMEM operand 0']
  #allocation11 [shape = 's32[]', space=sflag, size = 0x4, offset = 0, fixed_abs, tag = 'sflag constant byte address 0x0 - dummy sync flag']
  #allocation12 [shape = 's32[]', space=sflag, size = 0x4, offset = 0, fixed_abs, tag = 'sflag constant byte address 0x0 - dummy sync flag']
  #allocation13 [shape = 'u32[]', space=smem, size = 0x4, offset = 0x44, fixed_abs, tag = 'smem constant byte address 0x44 - assertion arg 0']
  #allocation14 [shape = 'u32[]', space=smem, size = 0x4, offset = 0x48, fixed_abs, tag = 'smem constant byte address 0x48 - assertion arg 1']
  #allocation15 [shape = 's32[]', space=sflag, size = 0x4, offset = 0, fixed_abs, tag = 'sflag constant byte address 0x0 - dummy sync flag']
  #allocation16 [shape = 's32[]', space=sflag, size = 0x4, offset = 0, fixed_abs, tag = 'sflag constant byte address 0x0 - dummy sync flag']
  #allocation17 [shape = 's32[]', space=sflag, size = 0x4, offset = 0, fixed_abs, tag = 'sflag constant byte address 0x0 - dummy sync flag']
  #allocation18 [shape = 's32[]', space=sflag, size = 0x4, offset = 0, fixed_abs, tag = 'sflag constant byte address 0x0 - dummy sync flag']
  #allocation19 [shape = 's32[]', space=sflag, size = 0x4, offset = 0, fixed_abs, tag = 'sflag constant byte address 0x0 - dummy sync flag']
  #allocation20 [shape = 's32[]', space=sflag, size = 0x4, offset = 0, fixed_abs, tag = 'sflag constant byte address 0x0 - dummy sync flag']
  #allocation21 [shape = 's32[]', space=sflag, size = 0x4, offset = 0, fixed_abs, tag = 'sflag constant byte address 0x0 - dummy sync flag']
  #allocation22 [shape = 's32[]', space=sflag, size = 0x4, offset = 0, fixed_abs, tag = 'sflag constant byte address 0x0 - dummy sync flag']
  #allocation23 [shape = 's32[]', space=sflag, size = 0x4, offset = 0, fixed_abs, tag = 'sflag constant byte address 0x0 - dummy sync flag']
  #allocation24 [shape = 's32[]', space=sflag, size = 0x4, offset = 0, fixed_abs, tag = 'sflag constant byte address 0x0 - dummy sync flag']
  #allocation25 [shape = 's32[]', space=sflag, size = 0x4, offset = 0, fixed_abs, tag = 'sflag constant byte address 0x0 - dummy sync flag']
  #allocation26 [shape = 's32[]', space=sflag, size = 0x4, offset = 0, fixed_abs, tag = 'sflag constant byte address 0x0 - dummy sync flag']
  #allocation27 [shape = 's32[]', space=sflag, size = 0x4, offset = 0, fixed_abs, tag = 'sflag constant byte address 0x0 - dummy sync flag']
  #allocation28 [shape = 's32[]', space=sflag, size = 0x4, offset = 0, fixed_abs, tag = 'sflag constant byte address 0x0 - dummy sync flag']
  %s0 = inlined_call_operand.hbm [shape: s32[8], index: 0, kind: input, shape index: {}]
  %s1 = inlined_call_operand.hbm [shape: f32[50265,128], index: 1, kind: input, shape index: {}]
  %s2 = inlined_call_operand.hbm [shape: f32[8,128], index: 2, kind: input, shape index: {}]
  %s3 = inlined_call_operand.hbm [shape: f32[8,128], index: 3, kind: input, shape index: {}]
  %s4 = inlined_call_operand.hbm [shape: f32[8,128], index: 4, kind: output, shape index: {}]
  %s5 = sld [smem:[#allocation0]]
  $region58: #{tpu_custom_call.1} parent=0
    _
  %s7 = ssub.s32 1, %s5
  %s8 = scalar_select 0, %s7, %s5
  %10 = dma.hbm_to_smem %s0, 16, [#allocation4], [#allocation3]
  %11 = dma.done [#allocation3], 16
  %12 = sfence
  $region1: #{tpu_custom_call.1} parent=0
    #allocation5 [shape = 'u8[4096]{0}', space=vmem, size = 0x1000, scoped, tag = 'input window, operand 2, single buffered']
    #allocation6 [shape = 's32[1]{0}', space=sflag, size = 0x4, scoped, tag = 'scoped memory for tpu_custom_call.1']
    #allocation7 [shape = 's32[1]{0}', space=sflag, size = 0x4, scoped, tag = 'scoped memory for tpu_custom_call.1']
    #allocation8 [shape = 'u8[4096]{0}', space=vmem, size = 0x1000, scoped, tag = 'input window, operand 3, single buffered']
    #allocation9 [shape = 's32[1]{0}', space=sflag, size = 0x4, scoped, tag = 'scoped memory for tpu_custom_call.1']
    #allocation10 [shape = 'u8[4096]{0}', space=vmem, size = 0x1000, scoped, tag = 'output window, operand 0, single buffered']
    %13 = vsyncpa [#allocation6], 0
    %14 = vsyncpa [#allocation9], 0
    %15 = vsyncpa [#allocation7], 0
    // Predicated region
    $region2: #{tpu_custom_call.1} parent=1 // pred_check
      _
    $region3: #{tpu_custom_call.1} parent=1 // pred_check_branch
      %17 = sbr.rel (0) target = $region5
    $region4: #{tpu_custom_call.1} parent=1 // pred_region
      %s19 = ssub.s32 128, 128
      %20 = vsyncadd [#allocation6], %s19
      %s22 = sshll.u32 [#allocation5], 4
      %s23 = int_to_ptr.vmem [resolvable:$true] %s22
      %25 = dma.hbm_to_vmem [thread:$0]  %s2, 128, %s23, [#allocation6]
    $region5: #{tpu_custom_call.1} parent=1 // pred_fallthru
      _
    // Predicated region
    $region6: #{tpu_custom_call.1} parent=1 // pred_check
      _
    $region7: #{tpu_custom_call.1} parent=1 // pred_check_branch
      %27 = sbr.rel (0) target = $region9
    $region8: #{tpu_custom_call.1} parent=1 // pred_region
      %s29 = ssub.s32 128, 128
      %30 = vsyncadd [#allocation9], %s29
      %s32 = sshll.u32 [#allocation8], 4
      %s33 = int_to_ptr.vmem [resolvable:$true] %s32
      %35 = dma.hbm_to_vmem [thread:$0]  %s3, 128, %s33, [#allocation9]
    $region9: #{tpu_custom_call.1} parent=1 // pred_fallthru
      _
    // Predicated region
    $region10: #{tpu_custom_call.1} parent=1 // pred_check
      _
    $region11: #{tpu_custom_call.1} parent=1 // pred_check_branch
      %37 = sbr.rel (0) target = $region13
    $region12: #{tpu_custom_call.1} parent=1 // pred_region
      %38 = dma.done [#allocation6], 128
    $region13: #{tpu_custom_call.1} parent=1 // pred_fallthru
      _
    // Predicated region
    $region14: #{tpu_custom_call.1} parent=1 // pred_check
      _
    $region15: #{tpu_custom_call.1} parent=1 // pred_check_branch
      %40 = sbr.rel (0) target = $region17
    $region16: #{tpu_custom_call.1} parent=1 // pred_region
      %41 = dma.done [#allocation9], 128
    $region17: #{tpu_custom_call.1} parent=1 // pred_fallthru
      _
    %s42 = sld [smem:[#allocation4]]
    %p43 = scmp.gt.s32.totalorder %s42, 0
    %s44 = scalar_select %p43, %s42, 0
    %p45 = scmp.lt.s32.totalorder %s44, 50264
    %s46 = scalar_select %p45, %s44, 50264
    %s47 = sld [smem:[#allocation4 + $0x1]]
    %p48 = scmp.gt.s32.totalorder %s47, 0
    %s49 = scalar_select %p48, %s47, 0
    %p50 = scmp.lt.s32.totalorder %s49, 50264
    %s51 = scalar_select %p50, %s49, 50264
    %s52 = sld [smem:[#allocation4 + $0x2]]
    %p53 = scmp.gt.s32.totalorder %s52, 0
    %s54 = scalar_select %p53, %s52, 0
    %p55 = scmp.lt.s32.totalorder %s54, 50264
    %s56 = scalar_select %p55, %s54, 50264
    %s57 = sld [smem:[#allocation4 + $0x3]]
    %p58 = scmp.gt.s32.totalorder %s57, 0
    %s59 = scalar_select %p58, %s57, 0
    %p60 = scmp.lt.s32.totalorder %s59, 50264
    %s61 = scalar_select %p60, %s59, 50264
    %s62 = sld [smem:[#allocation4 + $0x4]]
    %p63 = scmp.gt.s32.totalorder %s62, 0
    %s64 = scalar_select %p63, %s62, 0
    %p65 = scmp.lt.s32.totalorder %s64, 50264
    %s66 = scalar_select %p65, %s64, 50264
    %s67 = sld [smem:[#allocation4 + $0x5]]
    %p68 = scmp.gt.s32.totalorder %s67, 0
    %s69 = scalar_select %p68, %s67, 0
    %p70 = scmp.lt.s32.totalorder %s69, 50264
    %s71 = scalar_select %p70, %s69, 50264
    %s72 = sld [smem:[#allocation4 + $0x6]]
    %p73 = scmp.gt.s32.totalorder %s72, 0
    %s74 = scalar_select %p73, %s72, 0
    %p75 = scmp.lt.s32.totalorder %s74, 50264
    %s76 = scalar_select %p75, %s74, 50264
    %s77 = sld [smem:[#allocation4 + $0x7]]
    %p78 = scmp.gt.s32.totalorder %s77, 0
    %s79 = scalar_select %p78, %s77, 0
    %p80 = scmp.lt.s32.totalorder %s79, 50264
    %s81 = scalar_select %p80, %s79, 50264
    %s82 = smul.addr %s46, 16
    %s83 = scalar_lea.hbm %s1, %s82
    // Predicated region
    $region18: #{tpu_custom_call.1} parent=1 // pred_check
      _
    $region19: #{tpu_custom_call.1} parent=1 // pred_check_branch
      %85 = sbr.rel target = $region21
    $region20: #{tpu_custom_call.1} parent=1 // pred_region
      %86 = sst [smem:[#allocation13]] [#allocation12]
      %87 = sst [smem:[#allocation14]] [#allocation11]
    $region21: #{tpu_custom_call.1} parent=1 // pred_fallthru
      _
    %89 = shalt.err (0)
    %s91 = sshll.u32 [#allocation10], 4
    %s92 = int_to_ptr.vmem [resolvable:$true] %s91
    %94 = dma.hbm_to_vmem [thread:$0]  %s83, 16, %s92, [#allocation2]
    %s95 = smul.addr %s51, 16
    %s96 = scalar_lea.hbm %s1, %s95
    %s97 = scalar_lea.vmem [#allocation10], 1
    %s98 = scalar_lea.sflag [#allocation2], 1
    // Predicated region
    $region22: #{tpu_custom_call.1} parent=1 // pred_check
      _
    $region23: #{tpu_custom_call.1} parent=1 // pred_check_branch
      %100 = sbr.rel target = $region25
    $region24: #{tpu_custom_call.1} parent=1 // pred_region
      %101 = sst [smem:[#allocation13]] [#allocation16]
      %102 = sst [smem:[#allocation14]] [#allocation15]
    $region25: #{tpu_custom_call.1} parent=1 // pred_fallthru
      _
    %104 = shalt.err (0)
    %s106 = sshll.u32 %s97, 4
    %s107 = int_to_ptr.vmem [resolvable:$true] %s106
    %109 = dma.hbm_to_vmem [thread:$0]  %s96, 16, %s107, %s98
    %s110 = smul.addr %s56, 16
    %s111 = scalar_lea.hbm %s1, %s110
    %s112 = scalar_lea.vmem [#allocation10], 2
    %s113 = scalar_lea.sflag [#allocation2], 2
    // Predicated region
    $region26: #{tpu_custom_call.1} parent=1 // pred_check
      _
    $region27: #{tpu_custom_call.1} parent=1 // pred_check_branch
      %115 = sbr.rel target = $region29
    $region28: #{tpu_custom_call.1} parent=1 // pred_region
      %116 = sst [smem:[#allocation13]] [#allocation18]
      %117 = sst [smem:[#allocation14]] [#allocation17]
    $region29: #{tpu_custom_call.1} parent=1 // pred_fallthru
      _
    %119 = shalt.err (0)
    %s121 = sshll.u32 %s112, 4
    %s122 = int_to_ptr.vmem [resolvable:$true] %s121
    %124 = dma.hbm_to_vmem [thread:$0]  %s111, 16, %s122, %s113
    %s125 = smul.addr %s61, 16
    %s126 = scalar_lea.hbm %s1, %s125
    %s127 = scalar_lea.vmem [#allocation10], 3
    %s128 = scalar_lea.sflag [#allocation2], 3
    // Predicated region
    $region30: #{tpu_custom_call.1} parent=1 // pred_check
      _
    $region31: #{tpu_custom_call.1} parent=1 // pred_check_branch
      %130 = sbr.rel target = $region33
    $region32: #{tpu_custom_call.1} parent=1 // pred_region
      %131 = sst [smem:[#allocation13]] [#allocation20]
      %132 = sst [smem:[#allocation14]] [#allocation19]
    $region33: #{tpu_custom_call.1} parent=1 // pred_fallthru
      _
    %134 = shalt.err (0)
    %s136 = sshll.u32 %s127, 4
    %s137 = int_to_ptr.vmem [resolvable:$true] %s136
    %139 = dma.hbm_to_vmem [thread:$0]  %s126, 16, %s137, %s128
    %s140 = smul.addr %s66, 16
    %s141 = scalar_lea.hbm %s1, %s140
    %s142 = scalar_lea.vmem [#allocation10], 4
    %s143 = scalar_lea.sflag [#allocation2], 4
    // Predicated region
    $region34: #{tpu_custom_call.1} parent=1 // pred_check
      _
    $region35: #{tpu_custom_call.1} parent=1 // pred_check_branch
      %145 = sbr.rel target = $region37
    $region36: #{tpu_custom_call.1} parent=1 // pred_region
      %146 = sst [smem:[#allocation13]] [#allocation22]
      %147 = sst [smem:[#allocation14]] [#allocation21]
    $region37: #{tpu_custom_call.1} parent=1 // pred_fallthru
      _
    %149 = shalt.err (0)
    %s151 = sshll.u32 %s142, 4
    %s152 = int_to_ptr.vmem [resolvable:$true] %s151
    %154 = dma.hbm_to_vmem [thread:$0]  %s141, 16, %s152, %s143
    %s155 = smul.addr %s71, 16
    %s156 = scalar_lea.hbm %s1, %s155
    %s157 = scalar_lea.vmem [#allocation10], 5
    %s158 = scalar_lea.sflag [#allocation2], 5
    // Predicated region
    $region38: #{tpu_custom_call.1} parent=1 // pred_check
      _
    $region39: #{tpu_custom_call.1} parent=1 // pred_check_branch
      %160 = sbr.rel target = $region41
    $region40: #{tpu_custom_call.1} parent=1 // pred_region
      %161 = sst [smem:[#allocation13]] [#allocation24]
      %162 = sst [smem:[#allocation14]] [#allocation23]
    $region41: #{tpu_custom_call.1} parent=1 // pred_fallthru
      _
    %164 = shalt.err (0)
    %s166 = sshll.u32 %s157, 4
    %s167 = int_to_ptr.vmem [resolvable:$true] %s166
    %169 = dma.hbm_to_vmem [thread:$0]  %s156, 16, %s167, %s158
    %s170 = smul.addr %s76, 16
    %s171 = scalar_lea.hbm %s1, %s170
    %s172 = scalar_lea.vmem [#allocation10], 6
    %s173 = scalar_lea.sflag [#allocation2], 6
    // Predicated region
    $region42: #{tpu_custom_call.1} parent=1 // pred_check
      _
    $region43: #{tpu_custom_call.1} parent=1 // pred_check_branch
      %175 = sbr.rel target = $region45
    $region44: #{tpu_custom_call.1} parent=1 // pred_region
      %176 = sst [smem:[#allocation13]] [#allocation26]
      %177 = sst [smem:[#allocation14]] [#allocation25]
    $region45: #{tpu_custom_call.1} parent=1 // pred_fallthru
      _
    %179 = shalt.err (0)
    %s181 = sshll.u32 %s172, 4
    %s182 = int_to_ptr.vmem [resolvable:$true] %s181
    %184 = dma.hbm_to_vmem [thread:$0]  %s171, 16, %s182, %s173
    %s185 = smul.addr %s81, 16
    %s186 = scalar_lea.hbm %s1, %s185
    %s187 = scalar_lea.vmem [#allocation10], 7
    %s188 = scalar_lea.sflag [#allocation2], 7
    // Predicated region
    $region46: #{tpu_custom_call.1} parent=1 // pred_check
      _
    $region47: #{tpu_custom_call.1} parent=1 // pred_check_branch
      %190 = sbr.rel target = $region49
    $region48: #{tpu_custom_call.1} parent=1 // pred_region
      %191 = sst [smem:[#allocation13]] [#allocation28]
      %192 = sst [smem:[#allocation14]] [#allocation27]
    $region49: #{tpu_custom_call.1} parent=1 // pred_fallthru
      _
    %194 = shalt.err (0)
    %s196 = sshll.u32 %s187, 4
    %s197 = int_to_ptr.vmem [resolvable:$true] %s196
    %199 = dma.hbm_to_vmem [thread:$0]  %s186, 16, %s197, %s188
    %s200 = smul.u32 1, 1
    %s201 = sshll.u32 %s200, 4
    %202 = dma.done [#allocation2], %s201
    %s203 = sshll.u32 %s200, 4
    %204 = dma.done %s98, %s203
    %s205 = sshll.u32 %s200, 4
    %206 = dma.done %s113, %s205
    %s207 = sshll.u32 %s200, 4
    %208 = dma.done %s128, %s207
    %s209 = sshll.u32 %s200, 4
    %210 = dma.done %s143, %s209
    %s211 = sshll.u32 %s200, 4
    %212 = dma.done %s158, %s211
    %s213 = sshll.u32 %s200, 4
    %214 = dma.done %s173, %s213
    %s215 = sshll.u32 %s200, 4
    %216 = dma.done %s188, %s215
    %v217 = vld [vmem:[#allocation10] sm:$0xff]
    %v218 = vld [vmem:[#allocation5] sm:$0xff]
    %v219 = vmul.f32 %v217, %v218
    %v220 = vld [vmem:[#allocation8] sm:$0xff]
    %v221 = vadd.f32 %v219, %v220
    %222 = vst [vmem:[#allocation10] sm:$0xff] %v221
    // Predicated region
    $region50: #{tpu_custom_call.1} parent=1 // pred_check
      _
    $region51: #{tpu_custom_call.1} parent=1 // pred_check_branch
      %224 = sbr.rel (0) target = $region53
    $region52: #{tpu_custom_call.1} parent=1 // pred_region
      %s226 = ssub.s32 128, 128
      %227 = vsyncadd [#allocation7], %s226
      %s229 = sshll.u32 [#allocation10], 4
      %s230 = int_to_ptr.vmem [resolvable:$true] %s229
      %232 = dma.vmem_to_hbm [thread:$0]  %s230, 128, %s4, [#allocation7]
    $region53: #{tpu_custom_call.1} parent=1 // pred_fallthru
      _
    // Predicated region
    $region54: #{tpu_custom_call.1} parent=1 // pred_check
      _
    $region55: #{tpu_custom_call.1} parent=1 // pred_check_branch
      %234 = sbr.rel (0) target = $region57
    $region56: #{tpu_custom_call.1} parent=1 // pred_region
      %235 = dma.done [#allocation7], 128
    $region57: #{tpu_custom_call.1} parent=1 // pred_fallthru
      _
    %236 = vsyncpa [#allocation6], 1
    %237 = vsyncpa [#allocation9], 1
    %238 = vsyncpa [#allocation7], 1
  %239 = vsyncmov [#allocation2]
  %s240 = vpop.sfrf %239
  %p241 = scmp.eq.s32.totalorder %s240, 0
  %p242 = pneg %p241
  %244 = shalt.err (%p242)
  %s245 = scalar_lea.sflag [#allocation2], 1
  %246 = vsyncmov %s245
  %s247 = vpop.sfrf %246
  %p248 = scmp.eq.s32.totalorder %s247, 0
  %p249 = pneg %p248
  %251 = shalt.err (%p249)
  %s252 = scalar_lea.sflag [#allocation2], 2
  %253 = vsyncmov %s252
  %s254 = vpop.sfrf %253
  %p255 = scmp.eq.s32.totalorder %s254, 0
  %p256 = pneg %p255
  %258 = shalt.err (%p256)
  %s259 = scalar_lea.sflag [#allocation2], 3
  %260 = vsyncmov %s259
  %s261 = vpop.sfrf %260
  %p262 = scmp.eq.s32.totalorder %s261, 0
  %p263 = pneg %p262
  %265 = shalt.err (%p263)
  %s266 = scalar_lea.sflag [#allocation2], 4
  %267 = vsyncmov %s266
  %s268 = vpop.sfrf %267
  %p269 = scmp.eq.s32.totalorder %s268, 0
  %p270 = pneg %p269
  %272 = shalt.err (%p270)
  %s273 = scalar_lea.sflag [#allocation2], 5
  %274 = vsyncmov %s273
  %s275 = vpop.sfrf %274
  %p276 = scmp.eq.s32.totalorder %s275, 0
  %p277 = pneg %p276
  %279 = shalt.err (%p277)
  %s280 = scalar_lea.sflag [#allocation2], 6
  %281 = vsyncmov %s280
  %s282 = vpop.sfrf %281
  %p283 = scmp.eq.s32.totalorder %s282, 0
  %p284 = pneg %p283
  %286 = shalt.err (%p284)
  %s287 = scalar_lea.sflag [#allocation2], 7
  %288 = vsyncmov %s287
  %s289 = vpop.sfrf %288
  %p290 = scmp.eq.s32.totalorder %s289, 0
  %p291 = pneg %p290
  %293 = shalt.err (%p291)

</llo_original>
